<compile_context>
chip_gen: v5e
topology: v5e:2x2
jax: 0.10.0
libtpu: 0.0.40
codegen_flags: <defaults>
</compile_context>

<pallas_src>
import functools

import jax
import jax.numpy as jnp
import numpy as np
from jax import lax
from jax.experimental import pallas as pl
from jax.experimental.pallas import tpu as pltpu


def _round_up(x, m):
    return ((x + m - 1) // m) * m


def _pick_tile(total, target, quantum=1):
    """Largest divisor of `total` <= target that is a multiple of `quantum`.
    Falls back to `total` (single tile) if none exists."""
    target = max(1, min(int(target), int(total)))
    for cand in range(target, 0, -1):
        if total % cand == 0 and cand % quantum == 0:
            return cand
    return total


# ----------------------------------------------------------------------------
# Kernel 1: tiled AdaptiveAvgPool2d(1) + 1x1 conv + sigmoid (Attention module)
# fused with the aggregated-bias matmul.  grid = (batch, H-tiles).
# ----------------------------------------------------------------------------
def _attn_pool_kernel(x_ref, attn_w_ref, cond_b_ref, att_ref, aggb_ref, psum,
                      *, inv_hw):
    # x_ref:      (1, TH, Wp, C)  one H slab of the zero-padded input
    # attn_w_ref: (C, K)          attention 1x1-conv weight
    # cond_b_ref: (K, O_p)        expert bias bank (Cout lane-padded)
    # att_ref:    (1, 1, K)       sigmoid gates for this sample
    # aggb_ref:   (1, 1, O_p)     aggregated bias for this sample
    # psum:       (1, C) f32      running spatial sum (persists across H tiles)
    t = pl.program_id(1)

    @pl.when(t == 0)
    def _init():
        psum[...] = jnp.zeros_like(psum)

    x = x_ref[0].astype(jnp.float32)                       # (TH, Wp, C)
    psum[...] += jnp.sum(x, axis=(0, 1))[None, :]          # (1, C)

    @pl.when(t == pl.num_programs(1) - 1)
    def _finalize():
        # Zero padding does not change the sum, so dividing by H*W gives the
        # exact average pool of the unpadded input.
        pooled = psum[...] * inv_hw                        # (1, C)
        logits = jnp.dot(pooled, attn_w_ref[...],
                         preferred_element_type=jnp.float32)
        att = jax.nn.sigmoid(logits)                       # (1, K)  (module uses sigmoid)
        att_ref[0] = att
        aggb_ref[0] = jnp.dot(att, cond_b_ref[...],
                              preferred_element_type=jnp.float32)


# ----------------------------------------------------------------------------
# Kernel 2: per-sample aggregated weights, tiled over the flattened F axis.
# ----------------------------------------------------------------------------
def _mix_kernel(att_ref, bank_ref, aggw_ref):
    # att_ref:  (bs, K)     gates
    # bank_ref: (K, TF)     one F tile of the pre-permuted expert weight bank
    # aggw_ref: (bs, TF)    aggregated weights (already HWIO-ordered)
    # NOTE: M=bs and K=num_experts are tiny; this kernel is bound by the HBM
    # read of the bank tile, so a plain (padded) MXU dot is fine here.
    bank = bank_ref[...]
    att = att_ref[...].astype(bank.dtype)
    aggw_ref[...] = jnp.dot(att, bank,
                            preferred_element_type=jnp.float32
                            ).astype(aggw_ref.dtype)


# ----------------------------------------------------------------------------
# Kernel 3: per-sample conv2d, grid = (batch, H-tiles), manual double-buffered
# DMA of the (overlapping, halo-carrying) input H slabs from HBM.
# ----------------------------------------------------------------------------
def _condconv_kernel(x_hbm, w_ref, b_ref, o_ref, xbuf, sem,
                     *, kh, kw, stride, dilation, th, th_in, wo):
    # x_hbm: (bs, Hp, Wp, Cin)    padded input, left in HBM (pl.ANY)
    # w_ref: (1, kh*kw*Cin, O_p)  per-sample aggregated weight (HWIO flattened)
    # b_ref: (1, 1, O_p)          per-sample aggregated bias (f32)
    # o_ref: (1, TH, Wo, O_p)     output H tile (lane-dense last dim)
    # xbuf:  (2, TH_in, Wp, Cin)  manual double buffer for the input slab
    # sem:   (2,) DMA semaphores
    b = pl.program_id(0)
    t = pl.program_id(1)
    n_t = pl.num_programs(1)
    slot = t % 2
    rows_per_tile = th * stride

    def _start(tile_idx, dst_slot):
        pltpu.make_async_copy(
            x_hbm.at[b, pl.ds(tile_idx * rows_per_tile, th_in)],
            xbuf.at[dst_slot],
            sem.at[dst_slot]).start()

    # Prime the per-sample pipeline (overlapping H windows cannot be expressed
    # with a blocked BlockSpec, hence the manual DMA).
    @pl.when(t == 0)
    def _():
        _start(0, 0)

    # Wait for the slab we are about to compute on.
    pltpu.make_async_copy(
        x_hbm.at[b, pl.ds(t * rows_per_tile, th_in)],
        xbuf.at[slot],
        sem.at[slot]).wait()

    # Prefetch the next H tile of the same sample into the other slot.
    @pl.when(t + 1 < n_t)
    def _():
        _start(t + 1, 1 - slot)

    xb = xbuf[slot]                                        # (TH_in, Wp, Cin)
    cin = xb.shape[-1]
    o_p = o_ref.shape[-1]

    # im2col: fold all kh*kw taps into ONE MXU matmul (contraction kh*kw*Cin)
    # instead of kh*kw matmuls with a tiny contraction of Cin.
    slabs = []
    for dy in range(kh):
        for dx in range(kw):
            oy = dy * dilation
            ox = dx * dilation
            slabs.append(xb[oy: oy + stride * (th - 1) + 1: stride,
                            ox: ox + stride * (wo - 1) + 1: stride, :])
    patches = jnp.concatenate(slabs, axis=-1)              # (TH, Wo, kh*kw*Cin)
    patches = patches.reshape(th * wo, kh * kw * cin)      # one relayout per tile

    acc = jnp.dot(patches, w_ref[0], preferred_element_type=jnp.float32)
    acc = acc + b_ref[0]                                   # (1, O_p) broadcast
    o_ref[0] = acc.reshape(th, wo, o_p).astype(o_ref.dtype)


# ----------------------------------------------------------------------------
# Wrapper: layout conversion, lane padding, tiling choices, pallas_call glue.
# ----------------------------------------------------------------------------
def cond_conv_forward(x_nchw, params, *, stride=1, padding=0, dilation=1,
                      groups=1, compute_dtype=jnp.bfloat16,
                      h_tile=None, pool_h_tile=None, f_tile_target=65536):
    assert groups == 1  # TODO(synk): grouped CondConv (groups > 1) not implemented.

    attn_w = params["attn_w"].astype(jnp.float32)   # (C, K)
    cond_w = params["cond_w"]                       # (K, O, C, kh, kw)
    cond_b = params["cond_b"].astype(jnp.float32)   # (K, O)

    bs, c, h, w = x_nchw.shape
    k_experts, o, _, kh, kw = cond_w.shape
    out_dtype = x_nchw.dtype
    itemsize = np.dtype(compute_dtype).itemsize

    # Lane-dense output channels: pad Cout to a multiple of 128 so the conv
    # output store uses full 128-lane vregs (a no-op for real Cout >= 128).
    # Cin is deliberately NOT zero-padded to 128: for tiny Cin that would
    # multiply HBM traffic by 128/Cin.
    # TODO(synk): for very small Cin a spatial-packed channel layout would be
    # needed for full lane utilization of x.
    o_p = _round_up(o, 128)

    # ---- wrapper-side layout prep (XLA glue, bank-sized or free) -----------
    x_pad = jnp.pad(jnp.transpose(x_nchw, (0, 2, 3, 1)).astype(compute_dtype),
                    ((0, 0), (padding, padding), (padding, padding), (0, 0)))
    hp, wp = x_pad.shape[1], x_pad.shape[2]

    # Pre-permute (+ Cout lane-pad) the expert bank ONCE:
    # (K,O,C,kh,kw) -> (K,kh,kw,C,O_p) -> (K, F_p), so agg_w is produced
    # directly in per-sample HWIO order.
    bank = jnp.pad(cond_w, ((0, 0), (0, o_p - o), (0, 0), (0, 0), (0, 0)))
    bank = jnp.transpose(bank, (0, 3, 4, 2, 1)).reshape(k_experts, -1)
    bank = bank.astype(compute_dtype)
    f_p = bank.shape[1]                              # kh*kw*C*O_p (multiple of 128)
    cond_b_p = jnp.pad(cond_b, ((0, 0), (0, o_p - o)))

    ho = (h + 2 * padding - dilation * (kh - 1) - 1) // stride + 1
    wo = (w + 2 * padding - dilation * (kw - 1) - 1) // stride + 1

    # ---- kernel 1: attention (tiled pool + 1x1 conv + sigmoid) + bias mix --
    pool_target = pool_h_tile if pool_h_tile is not None else \
        max(8, (1 << 20) // max(1, wp * c * itemsize))
    th_pool = _pick_tile(hp, pool_target)
    att, agg_b = pl.pallas_call(
        functools.partial(_attn_pool_kernel, inv_hw=1.0 / float(h * w)),
        out_shape=(jax.ShapeDtypeStruct((bs, 1, k_experts), jnp.float32),
                   jax.ShapeDtypeStruct((bs, 1, o_p), jnp.float32)),
        grid=(bs, hp // th_pool),
        in_specs=[
            pl.BlockSpec((1, th_pool, wp, c), lambda b, t: (b, t, 0, 0)),
            pl.BlockSpec((c, k_experts), lambda b, t: (0, 0)),
            pl.BlockSpec((k_experts, o_p), lambda b, t: (0, 0)),
        ],
        out_specs=(pl.BlockSpec((1, 1, k_experts), lambda b, t: (b, 0, 0)),
                   pl.BlockSpec((1, 1, o_p), lambda b, t: (b, 0, 0))),
        scratch_shapes=[pltpu.VMEM((1, c), jnp.float32)],
        compiler_params=pltpu.CompilerParams(
            dimension_semantics=("parallel", "arbitrary")),
    )(x_pad, attn_w, cond_b_p)

    # ---- kernel 2: aggregated weights, tiled over the flattened F axis -----
    tf = _pick_tile(f_p, f_tile_target, quantum=128)
    agg_w = pl.pallas_call(
        _mix_kernel,
        out_shape=jax.ShapeDtypeStruct((bs, f_p), compute_dtype),
        grid=(f_p // tf,),
        in_specs=[pl.BlockSpec((bs, k_experts), lambda f: (0, 0)),
                  pl.BlockSpec((k_experts, tf), lambda f: (0, f))],
        out_specs=pl.BlockSpec((bs, tf), lambda f: (0, f)),
        compiler_params=pltpu.CompilerParams(
            dimension_semantics=("parallel",)),
    )(att.reshape(bs, k_experts), bank)
    agg_w = agg_w.reshape(bs, kh * kw * c, o_p)      # free row-major reshape

    # ---- kernel 3: per-sample conv, H-tiled, manual double-buffered DMA ----
    conv_target = h_tile if h_tile is not None else \
        max(8, (2 << 20) // max(1, wp * c * itemsize * stride))
    th = _pick_tile(ho, conv_target)
    n_ht = ho // th
    th_in = (th - 1) * stride + dilation * (kh - 1) + 1

    kern = functools.partial(_condconv_kernel, kh=kh, kw=kw, stride=stride,
                             dilation=dilation, th=th, th_in=th_in, wo=wo)
    out_nhwc = pl.pallas_call(
        kern,
        out_shape=jax.ShapeDtypeStruct((bs, ho, wo, o_p), out_dtype),
        grid=(bs, n_ht),
        in_specs=[
            pl.BlockSpec(memory_space=pl.ANY),                        # x in HBM
            pl.BlockSpec((1, kh * kw * c, o_p), lambda b, t: (b, 0, 0)),
            pl.BlockSpec((1, 1, o_p), lambda b, t: (b, 0, 0)),
        ],
        out_specs=pl.BlockSpec((1, th, wo, o_p), lambda b, t: (b, t, 0, 0)),
        scratch_shapes=[pltpu.VMEM((2, th_in, wp, c), compute_dtype),
                        pltpu.SemaphoreType.DMA((2,))],
        # The H-tile axis must stay "arbitrary": the manual double-buffer
        # chains consecutive grid steps of one sample.  The batch axis is safe
        # to shard across TensorCores (v7x megacore).
        compiler_params=pltpu.CompilerParams(
            dimension_semantics=("parallel", "arbitrary")),
    )(x_pad, agg_w, agg_b)

    # Drop the Cout lane padding and return NCHW (matches torch output.view).
    return jnp.transpose(out_nhwc[..., :o], (0, 3, 1, 2))


# ----------------------------------------------------------------------------
# Pure-JAX reference (mirrors the PyTorch forward exactly, via grouped conv).
# ----------------------------------------------------------------------------
def _reference(x_nchw, params, stride, padding, dilation):
    attn_w = params["attn_w"]
    cond_w = params["cond_w"]
    cond_b = params["cond_b"]
    bs, c, h, w = x_nchw.shape
    k_experts, o, _, kh, kw = cond_w.shape
    pooled = jnp.mean(x_nchw, axis=(2, 3))               # (bs, C)
    att = jax.nn.sigmoid(pooled @ attn_w)                # (bs, K)
    agg_w = (att @ cond_w.reshape(k_experts, -1)).reshape(bs * o, c, kh, kw)
    agg_b = (att @ cond_b).reshape(-1)
    x_g = x_nchw.reshape(1, bs * c, h, w)
    out = lax.conv_general_dilated(
        x_g, agg_w, window_strides=(stride, stride),
        padding=[(padding, padding), (padding, padding)],
        rhs_dilation=(dilation, dilation),
        feature_group_count=bs,
        dimension_numbers=("NCHW", "OIHW", "NCHW"))
    out = out + agg_b[None, :, None, None]
    return out.reshape(bs, o, out.shape[2], out.shape[3])


if __name__ == "__main__":
    key = jax.random.PRNGKey(0)
    bs, c, h, w = 2, 4, 16, 16
    K, o, ks = 4, 8, 3
    stride, padding, dilation = 1, 1, 1

    k1, k2, k3, k4 = jax.random.split(key, 4)
    x = jax.random.normal(k1, (bs, c, h, w), jnp.float32)

    # Deterministic synthetic init (shapes follow the module's __init__):
    #  - attention 1x1 conv weight (K, C, 1, 1), kaiming_normal(fan_out=K); stored as (C, K)
    attn_w = jax.random.normal(k2, (c, K), jnp.float32) * jnp.sqrt(2.0 / K)
    #  - expert weight bank (K, O, C, ks, ks), kaiming_uniform per expert
    fan_in = c * ks * ks
    bound = (6.0 / fan_in) ** 0.5
    cond_w = jax.random.uniform(k3, (K, o, c, ks, ks), jnp.float32, -bound, bound)
    #  - expert bias bank (K, O) ~ randn
    cond_b = jax.random.normal(k4, (K, o), jnp.float32)

    params = {"attn_w": attn_w, "cond_w": cond_w, "cond_b": cond_b}

    ref = _reference(x, params, stride, padding, dilation)

    # f32 compute path: tight check against the XLA reference.
    out_f32 = cond_conv_forward(x, params, stride=stride, padding=padding,
                                dilation=dilation, compute_dtype=jnp.float32,
                                h_tile=8, pool_h_tile=6, f_tile_target=2304)
    out_f32 = jax.block_until_ready(out_f32)
    np.testing.assert_allclose(np.asarray(out_f32), np.asarray(ref),
                               rtol=1e-3, atol=1e-3)

    # bf16 compute path (default, per v6e/v7x guidance): loose sanity check.
    out_bf16 = cond_conv_forward(x, params, stride=stride, padding=padding,
                                 dilation=dilation, compute_dtype=jnp.bfloat16,
                                 h_tile=8, pool_h_tile=6, f_tile_target=2304)
    out_bf16 = jax.block_until_ready(out_bf16)
    np.testing.assert_allclose(np.asarray(out_bf16), np.asarray(ref),
                               rtol=1e-1, atol=1e-1)

    print("KERNEL_OK")
</pallas_src>

<mosaic_0001>
module attributes {stable_mosaic.version = 11 : i64} {
  func.func @_attn_pool_kernel(%arg0: i32, %arg1: i32, %arg2: memref<1x6x18x4xf32, #tpu.memory_space<vmem>>, %arg3: memref<4x4xf32, #tpu.memory_space<vmem>>, %arg4: memref<4x128xf32, #tpu.memory_space<vmem>>, %arg5: memref<1x1x4xf32, #tpu.memory_space<vmem>>, %arg6: memref<1x1x128xf32, #tpu.memory_space<vmem>>, %arg7: memref<1x4xf32, #tpu.memory_space<vmem>>) attributes {dimension_semantics = [#tpu.dimension_semantics<parallel>, #tpu.dimension_semantics<arbitrary>], iteration_bounds = array<i64: 2, 3>, scalar_prefetch = 0 : i64, scratch_operands = 1 : i64, tpu.core_type = #tpu.core_type<tc>, window_params = [{transform_indices = @transform_0, window_bounds = array<i64: 1, 6, 18, 4>}, {pipeline_mode = #tpu.pipeline_mode<synchronous>, transform_indices = @transform_1, window_bounds = array<i64: 4, 4>}, {pipeline_mode = #tpu.pipeline_mode<synchronous>, transform_indices = @transform_2, window_bounds = array<i64: 4, 128>}, {transform_indices = @transform_3, window_bounds = array<i64: 1, 1, 4>}, {transform_indices = @transform_4, window_bounds = array<i64: 1, 1, 128>}]} {
    %c0_i32 = arith.constant 0 : i32
    %0 = arith.cmpi eq, %arg1, %c0_i32 : i32
    %1 = arith.extui %0 : i1 to i32
    %c0_i32_0 = arith.constant 0 : i32
    %2 = arith.cmpi ne, %1, %c0_i32_0 : i32
    scf.if %2 {
      %cst_9 = arith.constant 0.000000e+00 : f32
      %13 = vector.broadcast %cst_9 : f32 to vector<1x4xf32>
      %c0_10 = arith.constant 0 : index
      %c0_11 = arith.constant 0 : index
      %14 = vector.load %arg7[%c0_10, %c0_11] : memref<1x4xf32, #tpu.memory_space<vmem>>, vector<1x4xf32>
      tpu.vector_store %arg7[%c0_10, %c0_11], %13 {strides = array<i32>} : memref<1x4xf32, #tpu.memory_space<vmem>>, vector<1x4xf32>,
    } else {
    }
    %c0 = arith.constant 0 : index
    %c0_1 = arith.constant 0 : index
    %c0_2 = arith.constant 0 : index
    %c0_3 = arith.constant 0 : index
    %3 = vector.load %arg2[%c0, %c0_1, %c0_2, %c0_3] : memref<1x6x18x4xf32, #tpu.memory_space<vmem>>, vector<1x6x18x4xf32>
    %4 = vector.shape_cast %3 : vector<1x6x18x4xf32> to vector<6x18x4xf32>
    %c0_4 = arith.constant 0 : index
    %c0_5 = arith.constant 0 : index
    %5 = vector.load %arg7[%c0_4, %c0_5] : memref<1x4xf32, #tpu.memory_space<vmem>>, vector<1x4xf32>
    %cst = arith.constant dense<0.000000e+00> : vector<4xf32>
    %6 = vector.multi_reduction <add>, %4, %cst [0, 1] : vector<6x18x4xf32> to vector<4xf32>
    %7 = vector.shape_cast %6 : vector<4xf32> to vector<1x4xf32>
    %8 = arith.addf %5, %7 : vector<1x4xf32>
    %c0_6 = arith.constant 0 : index
    %c0_7 = arith.constant 0 : index
    %9 = vector.load %arg7[%c0_6, %c0_7] : memref<1x4xf32, #tpu.memory_space<vmem>>, vector<1x4xf32>
    tpu.vector_store %arg7[%c0_6, %c0_7], %8 {strides = array<i32>} : memref<1x4xf32, #tpu.memory_space<vmem>>, vector<1x4xf32>,
    %c2_i32 = arith.constant 2 : i32
    %10 = arith.cmpi eq, %arg1, %c2_i32 : i32
    %11 = arith.extui %10 : i1 to i32
    %c0_i32_8 = arith.constant 0 : i32
    %12 = arith.cmpi ne, %11, %c0_i32_8 : i32
    scf.if %12 {
      %c0_9 = arith.constant 0 : index
      %c0_10 = arith.constant 0 : index
      %13 = vector.load %arg7[%c0_9, %c0_10] : memref<1x4xf32, #tpu.memory_space<vmem>>, vector<1x4xf32>
      %cst_11 = arith.constant 3.906250e-03 : f32
      %14 = vector.broadcast %cst_11 : f32 to vector<1x4xf32>
      %15 = arith.mulf %13, %14 : vector<1x4xf32>
      %c0_12 = arith.constant 0 : index
      %c0_13 = arith.constant 0 : index
      %16 = vector.load %arg3[%c0_12, %c0_13] : memref<4x4xf32, #tpu.memory_space<vmem>>, vector<4x4xf32>
      %cst_14 = arith.constant dense<0.000000e+00> : vector<1x4xf32>
      %17 = tpu.matmul %15, %16, %cst_14 {dimension_numbers = #tpu.dot_dimension_numbers<[1], [0], [0], [1], [0, 0, 1, 1], [], []>} : vector<1x4xf32>, vector<4x4xf32>, vector<1x4xf32> -> vector<1x4xf32>
      %18 = arith.negf %17 : vector<1x4xf32>
      %19 = math.exp %18 : vector<1x4xf32>
      %cst_15 = arith.constant 1.000000e+00 : f32
      %20 = vector.broadcast %cst_15 : f32 to vector<1x4xf32>
      %21 = arith.addf %20, %19 : vector<1x4xf32>
      %22 = arith.divf %20, %21 : vector<1x4xf32>
      %c0_16 = arith.constant 0 : index
      %c0_17 = arith.constant 0 : index
      %c0_18 = arith.constant 0 : index
      %23 = vector.load %arg5[%c0_16, %c0_17, %c0_18] : memref<1x1x4xf32, #tpu.memory_space<vmem>>, vector<1x1x4xf32>
      %24 = vector.shape_cast %23 : vector<1x1x4xf32> to vector<1x4xf32>
      %25 = vector.shape_cast %22 : vector<1x4xf32> to vector<1x1x4xf32>
      tpu.vector_store %arg5[%c0_16, %c0_17, %c0_18], %25 {strides = array<i32>} : memref<1x1x4xf32, #tpu.memory_space<vmem>>, vector<1x1x4xf32>,
      %c0_19 = arith.constant 0 : index
      %c0_20 = arith.constant 0 : index
      %26 = vector.load %arg4[%c0_19, %c0_20] : memref<4x128xf32, #tpu.memory_space<vmem>>, vector<4x128xf32>
      %cst_21 = arith.constant dense<0.000000e+00> : vector<1x128xf32>
      %27 = tpu.matmul %22, %26, %cst_21 {dimension_numbers = #tpu.dot_dimension_numbers<[1], [0], [0], [1], [0, 0, 1, 1], [], []>} : vector<1x4xf32>, vector<4x128xf32>, vector<1x128xf32> -> vector<1x128xf32>
      %c0_22 = arith.constant 0 : index
      %c0_23 = arith.constant 0 : index
      %c0_24 = arith.constant 0 : index
      %28 = vector.load %arg6[%c0_22, %c0_23, %c0_24] : memref<1x1x128xf32, #tpu.memory_space<vmem>>, vector<1x1x128xf32>
      %29 = vector.shape_cast %28 : vector<1x1x128xf32> to vector<1x128xf32>
      %30 = vector.shape_cast %27 : vector<1x128xf32> to vector<1x1x128xf32>
      tpu.vector_store %arg6[%c0_22, %c0_23, %c0_24], %30 {strides = array<i32>} : memref<1x1x128xf32, #tpu.memory_space<vmem>>, vector<1x1x128xf32>,
    } else {
    }
    return
  }
  func.func @transform_0(%arg0: i32, %arg1: i32) -> (i32, i32, i32, i32) {
    %c0_i32 = arith.constant 0 : i32
    %c0_i32_0 = arith.constant 0 : i32
    %c0_i32_1 = arith.constant 0 : i32
    return %arg0, %arg1, %c0_i32, %c0_i32_0 : i32, i32, i32, i32
  }
  func.func @transform_1(%arg0: i32, %arg1: i32) -> (i32, i32) {
    %c0_i32 = arith.constant 0 : i32
    %c0_i32_0 = arith.constant 0 : i32
    %c0_i32_1 = arith.constant 0 : i32
    return %c0_i32, %c0_i32_0 : i32, i32
  }
  func.func @transform_2(%arg0: i32, %arg1: i32) -> (i32, i32) {
    %c0_i32 = arith.constant 0 : i32
    %c0_i32_0 = arith.constant 0 : i32
    %c0_i32_1 = arith.constant 0 : i32
    return %c0_i32, %c0_i32_0 : i32, i32
  }
  func.func @transform_3(%arg0: i32, %arg1: i32) -> (i32, i32, i32) {
    %c0_i32 = arith.constant 0 : i32
    %c0_i32_0 = arith.constant 0 : i32
    %c0_i32_1 = arith.constant 0 : i32
    return %arg0, %c0_i32, %c0_i32_0 : i32, i32, i32
  }
  func.func @transform_4(%arg0: i32, %arg1: i32) -> (i32, i32, i32) {
    %c0_i32 = arith.constant 0 : i32
    %c0_i32_0 = arith.constant 0 : i32
    %c0_i32_1 = arith.constant 0 : i32
    return %arg0, %c0_i32, %c0_i32_0 : i32, i32, i32
  }
}

</mosaic_0001>

<llo_original>
// kernel: tpu_custom_call.1
$region0: #{tpu_custom_call.1}
  #allocation0 [shape = 'u32[]', space=smem, size = 0x4, offset = 0x4, fixed_abs, tag = 'smem constant byte address 0x4 - core index']
  #allocation1 [shape = 'u32[72,128]{1,0:T(1,128)}', space=vmem, size = 0x9000, scoped, tag = 'internal scratch']
  #allocation2 [shape = 'f32[1,4]{1,0:T(1,128)}', space=vmem, size = 0x200, scoped, tag = 'scratch operand']
  %s0 = inlined_call_operand.vmem [shape: f32[2,18,18,4], index: 0, kind: input, shape index: {}]
  %s1 = inlined_call_operand.vmem [shape: f32[4,4], index: 1, kind: input, shape index: {}]
  %s2 = inlined_call_operand.vmem [shape: f32[4,128], index: 2, kind: input, shape index: {}]
  %s3 = inlined_call_operand.hbm [shape: f32[2,1,4], index: 3, kind: output, shape index: {0}]
  %s4 = inlined_call_operand.hbm [shape: f32[2,1,128], index: 4, kind: output, shape index: {1}]
  %5 = xla_tuple %s3, %s4
  %s6 = sld [smem:[#allocation0]]
  $region61: #{tpu_custom_call.1} parent=0
    _
  %s8 = ssub.s32 1, %s6
  %s9 = scalar_select 0, %s8, %s6
  $region1: #{tpu_custom_call.1} parent=0
    #allocation3 [shape = 'u8[1024]{0}', space=vmem, size = 0x400, scoped, tag = 'output window, operand 0']
    #allocation4 [shape = 's32[2]{0}', space=sflag, size = 0x8, scoped, tag = 'scoped memory for tpu_custom_call.1']
    #allocation5 [shape = 'u8[1024]{0}', space=vmem, size = 0x400, scoped, tag = 'output window, operand 1']
    #allocation6 [shape = 's32[2]{0}', space=sflag, size = 0x8, scoped, tag = 'scoped memory for tpu_custom_call.1']
    %10 = vsyncpa [#allocation4], 0
    %s11 = scalar_lea.sflag [#allocation4], 1
    %12 = vsyncpa %s11, 0
    %13 = vsyncpa [#allocation6], 0
    %s14 = scalar_lea.sflag [#allocation6], 1
    %15 = vsyncpa %s14, 0
    loop: start=0, step=1, limit=8
    $region2: #{tpu_custom_call.1} parent=1 // loop_pre_header
      _
    $region3: #{tpu_custom_call.1} parent=1 // loop_header
      %s17 = sphi 0, %s21
      %p18 = scmp.ge.s32.totalorder %s17, 8
      %s24 = sphi 0, %s36
      %s25 = sphi 0, %s32
      %s26 = sphi 0, %s24
      %s27 = sphi 0, %s25
      %s28 = sphi 0, %s26
      %s29 = sphi 0, %s27
      %s41 = sphi 0, %s43
      %s44 = sphi 0, %s41
      %s45 = sphi 0, %s44
      %s61 = sphi 0, %s45
      %s65 = sphi 0, %s65
      %s67 = sphi 0, %s65
      %s68 = sphi 0, %s67
      %s82 = sphi 0, %s68
      %s86 = sphi 0, %s86
      %s88 = sphi 0, %s86
      %s89 = sphi 0, %s88
      %s103 = sphi 0, %s89
      %s109 = sphi 0, %s111
      %s112 = sphi 0, %s109
      %s113 = sphi 0, %s112
      %s129 = sphi 0, %s113
      %s135 = sphi 0, %s137
      %s138 = sphi 0, %s135
      %s139 = sphi 0, %s138
      %s155 = sphi 0, %s139
    $region4: #{tpu_custom_call.1} parent=1 // loop_header_branch
      %20 = sbr.rel (%p18) target = $region8
    $region5: #{tpu_custom_call.1} parent=1 // loop_body
      %s22 = ssub.s32 %s17, 1
      %s23 = ssub.s32 %s17, 2
      %s30 = sadd.s32 1, %s25
      %p31 = scmp.ge.s32.totalorder %s30, 3
      %s32 = scalar_select %p31, 0, %s30
      %s33 = sadd.s32 1, %s24
      %s34 = scalar_select %p31, %s33, %s24
      %p35 = scmp.ge.s32.totalorder %s34, 2
      %s36 = scalar_select %p35, 0, %s34
      %s37 = ssub.s32 %s24, %s36
      %s38 = ssub.s32 %s25, %s32
      %s39 = sor.u32 %s37, %s38
      %p40 = scmp.eq.s32.totalorder %s39, 0
      %s42 = sadd.s32 %s41, 1
      %s43 = scalar_select %p40, %s41, %s42
      %p46 = pneg %p40
      %p47 = scmp.eq.s32.totalorder %s17, 5
      %p48 = por %p46, %p47
      %p49 = scmp.ne.s32.totalorder %s41, %s44
      %p50 = scmp.eq.s32.totalorder %s17, 0
      %p51 = por %p49, %p50
      %p52 = scmp.ne.s32.totalorder %s41, %s44
      %p53 = scmp.eq.s32.totalorder %s22, 5
      %p54 = por %p52, %p53
      %p55 = scmp.ne.s32.totalorder %s44, %s45
      %p56 = scmp.eq.s32.totalorder %s22, 0
      %p57 = por %p55, %p56
      %p58 = scmp.ne.s32.totalorder %s44, %s45
      %p59 = scmp.eq.s32.totalorder %s23, 5
      %p60 = por %p58, %p59
      %p62 = scmp.ne.s32.totalorder %s45, %s61
      %p63 = scmp.eq.s32.totalorder %s23, 0
      %p64 = por %p62, %p63
      %s66 = sadd.s32 %s65, 1
      %p69 = scmp.eq.s32.totalorder %s17, 5
      %p70 = scmp.ne.s32.totalorder %s65, %s67
      %p71 = scmp.eq.s32.totalorder %s17, 0
      %p72 = por %p70, %p71
      %p73 = scmp.ne.s32.totalorder %s65, %s67
      %p74 = scmp.eq.s32.totalorder %s22, 5
      %p75 = por %p73, %p74
      %p76 = scmp.ne.s32.totalorder %s67, %s68
      %p77 = scmp.eq.s32.totalorder %s22, 0
      %p78 = por %p76, %p77
      %p79 = scmp.ne.s32.totalorder %s67, %s68
      %p80 = scmp.eq.s32.totalorder %s23, 5
      %p81 = por %p79, %p80
      %p83 = scmp.ne.s32.totalorder %s68, %s82
      %p84 = scmp.eq.s32.totalorder %s23, 0
      %p85 = por %p83, %p84
      %s87 = sadd.s32 %s86, 1
      %p90 = scmp.eq.s32.totalorder %s17, 5
      %p91 = scmp.ne.s32.totalorder %s86, %s88
      %p92 = scmp.eq.s32.totalorder %s17, 0
      %p93 = por %p91, %p92
      %p94 = scmp.ne.s32.totalorder %s86, %s88
      %p95 = scmp.eq.s32.totalorder %s22, 5
      %p96 = por %p94, %p95
      %p97 = scmp.ne.s32.totalorder %s88, %s89
      %p98 = scmp.eq.s32.totalorder %s22, 0
      %p99 = por %p97, %p98
      %p100 = scmp.ne.s32.totalorder %s88, %s89
      %p101 = scmp.eq.s32.totalorder %s23, 5
      %p102 = por %p100, %p101
      %p104 = scmp.ne.s32.totalorder %s89, %s103
      %p105 = scmp.eq.s32.totalorder %s23, 0
      %p106 = por %p104, %p105
      %s107 = ssub.s32 %s24, %s36
      %p108 = scmp.eq.s32.totalorder %s107, 0
      %s110 = sadd.s32 %s109, 1
      %s111 = scalar_select %p108, %s109, %s110
      %p114 = pneg %p108
      %p115 = scmp.eq.s32.totalorder %s17, 5
      %p116 = por %p114, %p115
      %p117 = scmp.ne.s32.totalorder %s109, %s112
      %p118 = scmp.eq.s32.totalorder %s17, 0
      %p119 = por %p117, %p118
      %p120 = scmp.ne.s32.totalorder %s109, %s112
      %p121 = scmp.eq.s32.totalorder %s22, 5
      %p122 = por %p120, %p121
      %p123 = scmp.ne.s32.totalorder %s112, %s113
      %p124 = scmp.eq.s32.totalorder %s22, 0
      %p125 = por %p123, %p124
      %p126 = scmp.ne.s32.totalorder %s112, %s113
      %p127 = scmp.eq.s32.totalorder %s23, 5
      %p128 = por %p126, %p127
      %p130 = scmp.ne.s32.totalorder %s113, %s129
      %p131 = scmp.eq.s32.totalorder %s23, 0
      %p132 = por %p130, %p131
      %s133 = ssub.s32 %s24, %s36
      %p134 = scmp.eq.s32.totalorder %s133, 0
      %s136 = sadd.s32 %s135, 1
      %s137 = scalar_select %p134, %s135, %s136
      %p140 = pneg %p134
      %p141 = scmp.eq.s32.totalorder %s17, 5
      %p142 = por %p140, %p141
      %p143 = scmp.ne.s32.totalorder %s135, %s138
      %p144 = scmp.eq.s32.totalorder %s17, 0
      %p145 = por %p143, %p144
      %p146 = scmp.ne.s32.totalorder %s135, %s138
      %p147 = scmp.eq.s32.totalorder %s22, 5
      %p148 = por %p146, %p147
      %p149 = scmp.ne.s32.totalorder %s138, %s139
      %p150 = scmp.eq.s32.totalorder %s22, 0
      %p151 = por %p149, %p150
      %p152 = scmp.ne.s32.totalorder %s138, %s139
      %p153 = scmp.eq.s32.totalorder %s23, 5
      %p154 = por %p152, %p153
      %p156 = scmp.ne.s32.totalorder %s139, %s155
      %p157 = scmp.eq.s32.totalorder %s23, 0
      %p158 = por %p156, %p157
      %p159 = scmp.le.s32.totalorder 1, %s17
      %p160 = scmp.lt.s32.totalorder %s17, 7
      %p161 = pnand %p159, %p160
      %p162 = pneg %p161
      // Predicated region
      $region9: #{tpu_custom_call.1} parent=5 // pred_check
        _
      $region10: #{tpu_custom_call.1} parent=5 // pred_check_branch
        %164 = sbr.rel (%p161) target = $region12
      $region11: #{tpu_custom_call.1} parent=5 // pred_region
        %s165 = ssub.s32 %s17, 1
        // Predicated region
        $region13: #{tpu_custom_call.1} parent=11 // pred_check
          %p166 = pneg %p78
        $region14: #{tpu_custom_call.1} parent=11 // pred_check_branch
          %168 = sbr.rel (%p166) target = $region16
        $region15: #{tpu_custom_call.1} parent=11 // pred_region
          _
        $region16: #{tpu_custom_call.1} parent=11 // pred_fallthru
          _
        // Predicated region
        $region17: #{tpu_custom_call.1} parent=11 // pred_check
          %p169 = pneg %p99
        $region18: #{tpu_custom_call.1} parent=11 // pred_check_branch
          %171 = sbr.rel (%p169) target = $region20
        $region19: #{tpu_custom_call.1} parent=11 // pred_region
          _
        $region20: #{tpu_custom_call.1} parent=11 // pred_fallthru
          _
      $region12: #{tpu_custom_call.1} parent=5 // pred_fallthru
        _
      %p172 = scmp.lt.s32.totalorder %s17, 6
      // Predicated region
      $region21: #{tpu_custom_call.1} parent=5 // pred_check
        %p173 = pneg %p172
      $region22: #{tpu_custom_call.1} parent=5 // pred_check_branch
        %175 = sbr.rel (%p173) target = $region24
      $region23: #{tpu_custom_call.1} parent=5 // pred_region
        // Predicated region
        $region25: #{tpu_custom_call.1} parent=23 // pred_check
          %p176 = pneg %p51
        $region26: #{tpu_custom_call.1} parent=23 // pred_check_branch
          %178 = sbr.rel (%p176) target = $region28
        $region27: #{tpu_custom_call.1} parent=23 // pred_region
          %s179 = smul.u32 6, %s25
          %p180 = scmp.lt.s32.totalorder %s24, 1
          %s181 = scalar_select %p180, %s24, 1
          %p182 = scmp.lt.s32.totalorder %s179, 17
          %s183 = scalar_select %p182, %s179, 17
          %s184 = smul.addr %s183, 3
          %s185 = smul.addr %s181, 54
          %s186 = sadd.s32 %s184, %s185
          %s187 = smul.addr %s186, 8
          %s188 = scalar_lea.vmem %s0, %s187
          %s189 = smul.u32 6, %s25
        $region28: #{tpu_custom_call.1} parent=23 // pred_fallthru
          _
      $region24: #{tpu_custom_call.1} parent=5 // pred_fallthru
        _
      %p190 = scmp.le.s32.totalorder 1, %s17
      %p191 = scmp.lt.s32.totalorder %s17, 7
      %p192 = pnand %p190, %p191
      %p193 = pneg %p192
      // Predicated region
      $region29: #{tpu_custom_call.1} parent=5 // pred_check
        _
      $region30: #{tpu_custom_call.1} parent=5 // pred_check_branch
        %195 = sbr.rel (%p192) target = $region32
      $region31: #{tpu_custom_call.1} parent=5 // pred_region
        %s196 = ssub.s32 %s17, 1
        %s197 = smul.u32 6, %s27
        %p198 = scmp.lt.s32.totalorder %s26, 1
        %s199 = scalar_select %p198, %s26, 1
        %p200 = scmp.lt.s32.totalorder %s197, 17
        %s201 = scalar_select %p200, %s197, 17
        %s202 = smul.addr %s201, 3
        %s203 = smul.addr %s199, 54
        %s204 = sadd.s32 %s202, %s203
        %s205 = smul.addr %s204, 8
        %s206 = scalar_lea.vmem %s0, %s205
        %p207 = pneg %p57
        %p208 = pneg %p54
        %p209 = pneg %p78
        %p210 = pneg %p75
        %p211 = pneg %p99
        %p212 = pneg %p96
        %p213 = pneg %p125
        %p214 = pneg %p122
        %s215 = sand.u32 %s112, 1
        %s216 = scalar_lea.sflag [#allocation4], %s215
        %s217 = sand.u32 %s112, 1
        %s218 = scalar_lea.vmem [#allocation3], %s217
        %p219 = pneg %p151
        %p220 = pneg %p148
        %s221 = sand.u32 %s138, 1
        %s222 = scalar_lea.sflag [#allocation6], %s221
        %s223 = sand.u32 %s138, 1
        %s224 = scalar_lea.vmem [#allocation5], %s223
        %s225 = smul.u32 6, %s27
        %p226 = scmp.lt.s32.totalorder %s26, 1
        %s227 = scalar_select %p226, %s26, 1
        %p228 = scmp.lt.s32.totalorder %s225, 17
        %s229 = scalar_select %p228, %s225, 17
        %s230 = smul.addr %s229, 3
        %s231 = smul.addr %s227, 54
        %s232 = sadd.s32 %s230, %s231
        %s233 = smul.addr %s232, 8
        %s234 = scalar_lea.vmem %s0, %s233
        %s235 = smul.u32 6, %s27
        %p236 = scmp.eq.s32.totalorder %s27, 0
        // Predicated region
        $region33: #{tpu_custom_call.1} parent=31 // pred_check
          %p237 = pneg %p236
        $region34: #{tpu_custom_call.1} parent=31 // pred_check_branch
          %239 = sbr.rel (%p237) target = $region36
        $region35: #{tpu_custom_call.1} parent=31 // pred_region
          %vm240 = vcmask 24576
          %241 = vst.msk [vmem:[#allocation2] sm:$0x1] %vm240, 0.0
        $region36: #{tpu_custom_call.1} parent=31 // pred_fallthru
          _
        %v242 = vld [vmem:[%s234] sm:$0xff]
        %v243 = vld [vmem:[%s234 + $0x8] sm:$0xff]
        %v244 = vld [vmem:[%s234 + $0x10] sm:$0x3]
        %v245 = vld [vmem:[%s234 + $0x18] sm:$0xff]
        %v246 = vld [vmem:[%s234 + $0x20] sm:$0xff]
        %v247 = vld [vmem:[%s234 + $0x28] sm:$0x3]
        %v248 = vld [vmem:[%s234 + $0x30] sm:$0xff]
        %v249 = vld [vmem:[%s234 + $0x38] sm:$0xff]
        %v250 = vld [vmem:[%s234 + $0x40] sm:$0x3]
        %v251 = vld [vmem:[%s234 + $0x48] sm:$0xff]
        %v252 = vld [vmem:[%s234 + $0x50] sm:$0xff]
        %v253 = vld [vmem:[%s234 + $0x58] sm:$0x3]
        %v254 = vld [vmem:[%s234 + $0x60] sm:$0xff]
        %v255 = vld [vmem:[%s234 + $0x68] sm:$0xff]
        %v256 = vld [vmem:[%s234 + $0x70] sm:$0x3]
        %v257 = vld [vmem:[%s234 + $0x78] sm:$0xff]
        %v258 = vld [vmem:[%s234 + $0x80] sm:$0xff]
        %v259 = vld [vmem:[%s234 + $0x88] sm:$0x3]
        %v260 = vld [vmem:[#allocation2] sm:$0x1]
        %vm261 = vcmask 31744
        %v262 = vsel %vm261, %v242, 0.0
        %v263 = vsel %vm261, %v243, 0.0
        %v264 = vadd.f32 %v262, %v263
        %vm265 = vcmask 25600
        %v266 = vsel %vm265, %v244, 0.0
        %v267 = vadd.f32 %v264, %v266
        %v268 = vsel %vm261, %v245, 0.0
        %v269 = vadd.f32 %v267, %v268
        %v270 = vsel %vm261, %v246, 0.0
        %v271 = vadd.f32 %v269, %v270
        %v272 = vsel %vm265, %v247, 0.0
        %v273 = vadd.f32 %v271, %v272
        %v274 = vsel %vm261, %v248, 0.0
        %v275 = vadd.f32 %v273, %v274
        %v276 = vsel %vm261, %v249, 0.0
        %v277 = vadd.f32 %v275, %v276
        %v278 = vsel %vm265, %v250, 0.0
        %v279 = vadd.f32 %v277, %v278
        %v280 = vsel %vm261, %v251, 0.0
        %v281 = vadd.f32 %v279, %v280
        %v282 = vsel %vm261, %v252, 0.0
        %v283 = vadd.f32 %v281, %v282
        %v284 = vsel %vm265, %v253, 0.0
        %v285 = vadd.f32 %v283, %v284
        %v286 = vsel %vm261, %v254, 0.0
        %v287 = vadd.f32 %v285, %v286
        %v288 = vsel %vm261, %v255, 0.0
        %v289 = vadd.f32 %v287, %v288
        %v290 = vsel %vm265, %v256, 0.0
        %v291 = vadd.f32 %v289, %v290
        %v292 = vsel %vm261, %v257, 0.0
        %v293 = vadd.f32 %v291, %v292
        %v294 = vsel %vm261, %v258, 0.0
        %v295 = vadd.f32 %v293, %v294
        %v296 = vsel %vm265, %v259, 0.0
        %v297 = vadd.f32 %v295, %v296
        %v298 = vrot.slane %v297, 4
        %v299 = vadd.f32 %v297, %v298
        %v300 = vrot.slane %v299, 2
        %v301 = vadd.f32 %v299, %v300
        %v302 = vrot.slane %v301, 1
        %v303 = vadd.f32 %v301, %v302
        %v304 = vadd.f32 %v260, %v303
        %vm305 = vcmask 24576
        %306 = vst.msk [vmem:[#allocation2] sm:$0x1] %vm305, %v304
        %p307 = scmp.eq.s32.totalorder %s27, 2
        // Predicated region
        $region37: #{tpu_custom_call.1} parent=31 // pred_check
          %p308 = pneg %p307
        $region38: #{tpu_custom_call.1} parent=31 // pred_check_branch
          %310 = sbr.rel (%p308) target = $region40
        $region39: #{tpu_custom_call.1} parent=31 // pred_region
          %v311 = vld [vmem:[#allocation2] sm:$0x1]
          %v312 = vmul.f32 %v311, 0.00390625
          %v313 = vld [vmem:[%s1] sm:$0xf]
          %v315 = vsel %vm261, %v312, 0
          %vm317 = vcmask 1043456
          %v319 = vsel %vm317, %v313, 0
          %321 = vmatpush.msra.mxu0 0.0
          %322 = vmatpush.msra.mxu0 0.0
          %323 = vmatpush.msra.mxu0 0.0
          %324 = vmatpush.msra.mxu0 0.0
          %325 = vmatpush.msra.mxu0 0.0
          %326 = vmatpush.msra.mxu0 0.0
          %327 = vmatpush.msra.mxu0 0.0
          %328 = vmatpush.msra.mxu0 0.0
          %329 = vmatpush.msra.mxu0 0.0
          %330 = vmatpush.msra.mxu0 0.0
          %331 = vmatpush.msra.mxu0 0.0
          %332 = vmatpush.msra.mxu0 0.0
          %333 = vmatpush.msra.mxu0 0.0
          %334 = vmatpush.msra.mxu0 0.0
          %335 = vmatpush.msra.mxu0 0.0
          %336 = vmatpush.msra.mxu0 %v319
          %337 = vmatmul.f32.gmra.mxu0 %v315
          %v338 = vpop.f32.mrf.mxu0
          %v339 = vadd.f32 0.0, %v338
          %340 = vdwg.mxu0
          %v341 = vxor.u32 %v339, 2147483648
          %v342 = vmul.f32 %v341, 1.442695
          %v343 = vpow.pop %v342
          %v344 = vadd.f32 %v343, 1.0
          %v345 = vrcp.pop %v344
          %v346 = vmul.f32 %v344, %v345
          %v347 = vsub.f32 1.0, %v346
          %v348 = vmul.f32 %v345, %v347
          %v349 = vadd.f32 %v345, %v348
          %vm350 = vweird.f32 %v344
          %vm351 = vweird.f32 %v345
          %vm352 = vmor %vm350, %vm351
          %v353 = vsel %vm352, %v345, %v349
          %v354 = vand.u32 2147483647, %v344
          %vm355 = vcmp.eq.f32.partialorder %v354, 8.507059e+37
          %v356 = vand.u32 %v344, 2147483648
          %v357 = vor.u32 1.1754944e-38, %v356
          %v358 = vsel %vm355, %v357, %v353
          %v359 = vmul.f32 1.0, %v358
          %360 = vst.msk [vmem:[%s218] sm:$0x1] %vm305, %v359
          %v361 = vld [vmem:[%s2] sm:$0xf]
          %v363 = vsel %vm261, %v359, 0
          %v366 = vsel %vm317, %v361, 0
          %368 = vmatpush.msra.mxu0 0.0
          %369 = vmatpush.msra.mxu0 0.0
          %370 = vmatpush.msra.mxu0 0.0
          %371 = vmatpush.msra.mxu0 0.0
          %372 = vmatpush.msra.mxu0 0.0
          %373 = vmatpush.msra.mxu0 0.0
          %374 = vmatpush.msra.mxu0 0.0
          %375 = vmatpush.msra.mxu0 0.0
          %376 = vmatpush.msra.mxu0 0.0
          %377 = vmatpush.msra.mxu0 0.0
          %378 = vmatpush.msra.mxu0 0.0
          %379 = vmatpush.msra.mxu0 0.0
          %380 = vmatpush.msra.mxu0 0.0
          %381 = vmatpush.msra.mxu0 0.0
          %382 = vmatpush.msra.mxu0 0.0
          %383 = vmatpush.msra.mxu0 %v366
          %384 = vmatmul.f32.gmra.mxu0 %v363
          %v385 = vpop.f32.mrf.mxu0
          %v386 = vadd.f32 0.0, %v385
          %387 = vdwg.mxu0
          %388 = vst [vmem:[%s224] sm:$0x1] %v386
        $region40: #{tpu_custom_call.1} parent=31 // pred_fallthru
          _
        %s389 = sand.u32 %s112, 1
        %s390 = scalar_lea.sflag [#allocation4], %s389
        %s391 = sand.u32 %s112, 1
        %s392 = scalar_lea.vmem [#allocation3], %s391
        %s393 = sand.u32 %s138, 1
        %s394 = scalar_lea.sflag [#allocation6], %s393
        %s395 = sand.u32 %s138, 1
        %s396 = scalar_lea.vmem [#allocation5], %s395
        // Predicated region
        $region41: #{tpu_custom_call.1} parent=31 // pred_check
          %p397 = pneg %p122
        $region42: #{tpu_custom_call.1} parent=31 // pred_check_branch
          %399 = sbr.rel (%p397) target = $region44
        $region43: #{tpu_custom_call.1} parent=31 // pred_region
          %401 = vsyncadd %s390, 0
          %s402 = scalar_lea.hbm %s3, %s26
          %s404 = sshll.u32 %s392, 4
          %s405 = int_to_ptr.vmem [resolvable:$true] %s404
          %s406 = sshll.u32 %s402, 4
          %s407 = int_to_ptr.hbm [resolvable:$true] %s406
          %409 = dma.vmem_to_hbm [thread:$0]  %s405, 16, %s407, %s390
        $region44: #{tpu_custom_call.1} parent=31 // pred_fallthru
          _
        // Predicated region
        $region45: #{tpu_custom_call.1} parent=31 // pred_check
          %p410 = pneg %p148
        $region46: #{tpu_custom_call.1} parent=31 // pred_check_branch
          %412 = sbr.rel (%p410) target = $region48
        $region47: #{tpu_custom_call.1} parent=31 // pred_region
          %414 = vsyncadd %s394, 0
          %s415 = scalar_lea.hbm %s4, %s26
          %s417 = sshll.u32 %s396, 4
          %s418 = int_to_ptr.vmem [resolvable:$true] %s417
          %s419 = sshll.u32 %s415, 4
          %s420 = int_to_ptr.hbm [resolvable:$true] %s419
          %422 = dma.vmem_to_hbm [thread:$0]  %s418, 16, %s420, %s394
        $region48: #{tpu_custom_call.1} parent=31 // pred_fallthru
          _
      $region32: #{tpu_custom_call.1} parent=5 // pred_fallthru
        _
      %p423 = scmp.le.s32.totalorder 2, %s17
      // Predicated region
      $region49: #{tpu_custom_call.1} parent=5 // pred_check
        %p424 = pneg %p423
      $region50: #{tpu_custom_call.1} parent=5 // pred_check_branch
        %426 = sbr.rel (%p424) target = $region52
      $region51: #{tpu_custom_call.1} parent=5 // pred_region
        %s427 = ssub.s32 %s17, 2
        // Predicated region
        $region53: #{tpu_custom_call.1} parent=51 // pred_check
          %p428 = pneg %p128
        $region54: #{tpu_custom_call.1} parent=51 // pred_check_branch
          %430 = sbr.rel (%p428) target = $region56
        $region55: #{tpu_custom_call.1} parent=51 // pred_region
          %s431 = sand.u32 %s113, 1
          %s432 = scalar_lea.sflag [#allocation4], %s431
          %s433 = sand.u32 %s113, 1
          %s434 = scalar_lea.vmem [#allocation3], %s433
          %436 = dma.done %s432, 16
        $region56: #{tpu_custom_call.1} parent=51 // pred_fallthru
          _
        // Predicated region
        $region57: #{tpu_custom_call.1} parent=51 // pred_check
          %p437 = pneg %p154
        $region58: #{tpu_custom_call.1} parent=51 // pred_check_branch
          %439 = sbr.rel (%p437) target = $region60
        $region59: #{tpu_custom_call.1} parent=51 // pred_region
          %s440 = sand.u32 %s139, 1
          %s441 = scalar_lea.sflag [#allocation6], %s440
          %s442 = sand.u32 %s139, 1
          %s443 = scalar_lea.vmem [#allocation5], %s442
          %445 = dma.done %s441, 16
        $region60: #{tpu_custom_call.1} parent=51 // pred_fallthru
          _
      $region52: #{tpu_custom_call.1} parent=5 // pred_fallthru
        _
    $region6: #{tpu_custom_call.1} parent=1 // loop_footer
      %s21 = sadd.s32 1, %s17
    $region7: #{tpu_custom_call.1} parent=1 // loop_footer_branch
      %16 = sbr.rel target = $region3
    $region8: #{tpu_custom_call.1} parent=1 // loop_exit
      _
    %446 = vsyncpa [#allocation4], 1
    %s447 = scalar_lea.sflag [#allocation4], 1
    %448 = vsyncpa %s447, 1
    %449 = vsyncpa [#allocation6], 1
    %s450 = scalar_lea.sflag [#allocation6], 1
    %451 = vsyncpa %s450, 1

</llo_original>
